<compile_context>
chip_gen: v5e
topology: v5e:2x2
jax: 0.10.0
libtpu: 0.0.40
codegen_flags: <defaults>
</compile_context>

<pallas_src>
import math
from functools import partial

import jax
import jax.numpy as jnp
import numpy as np
from jax.experimental import pallas as pl
from jax.experimental.pallas import tpu as pltpu


def _transformer_layer_kernel(num_heads, head_dim, scale,
                              x_ref, wqkv_ref, bqkv_ref,
                              wo_ref, bo_ref, wf_ref,
                              o_ref):
    f32 = jnp.float32
    mdt = wqkv_ref.dtype                       # matmul input dtype (f32 or bf16)
    S = x_ref.shape[1]
    C = x_ref.shape[2]
    H, dh = num_heads, head_dim

    x = x_ref[0].astype(f32)                   # (S, C) residual path in f32
    x_m = x.astype(mdt)

    # Fused + folded QKV projection: (S, 3C) = x @ [Wq|Wk|Wv] + [bq|bk|bv].
    qkv = jnp.dot(x_m, wqkv_ref[...], preferred_element_type=f32) + bqkv_ref[...]

    qp = qkv[:, 0 * C:1 * C] * scale           # PyTorch scales q by head_dim**-0.5
    kp = qkv[:, 1 * C:2 * C]
    vp = qkv[:, 2 * C:3 * C]

    # Batched per-head attention: (S, C) -> (S, H, dh), heads are a batch dim
    # of the dot_general (no Python loop, no concat, no explicit k transpose).
    q3 = qp.reshape(S, H, dh).astype(mdt)
    k3 = kp.reshape(S, H, dh).astype(mdt)
    v3 = vp.reshape(S, H, dh).astype(mdt)

    s = jnp.einsum("qhd,khd->hqk", q3, k3,
                   preferred_element_type=f32)                 # (H, S, S)

    # Softmax in f32; divide goes to the EUP via approx reciprocal.
    s = s - jnp.max(s, axis=-1, keepdims=True)
    p = jnp.exp(s)
    p = p * pl.reciprocal(jnp.sum(p, axis=-1, keepdims=True), approx=True)

    o = jnp.einsum("hqk,khd->qhd", p.astype(mdt), v3,
                   preferred_element_type=f32)                 # (S, H, dh)
    attn = o.reshape(S, C)

    # Attention out-projection (bias=True) + residual.
    x1 = (jnp.dot(attn.astype(mdt), wo_ref[...], preferred_element_type=f32)
          + bo_ref[...] + x)

    # Folded feed-forward: fc2(fc1(x1)) + x1 == x1 @ (Wfc2 @ Wfc1)^T + x1.
    y = jnp.dot(x1.astype(mdt), wf_ref[...], preferred_element_type=f32) + x1

    o_ref[0] = y.astype(o_ref.dtype)


def transformer_layer_pallas(x, params, num_heads, *, matmul_dtype=jnp.bfloat16):
    """x: (S, B, C) float32. Returns (S, B, C)."""
    S, B, C = x.shape
    assert C % num_heads == 0
    head_dim = C // num_heads
    scale = 1.0 / math.sqrt(head_dim)

    # ---- offline algebraic folding (exact: chained bias-free linears) ----
    # qp = (x @ Wq^T) @ Wq_in^T + bq_in == x @ (Wq_in @ Wq)^T + bq_in
    wq_t = (params["wq_in"] @ params["wq"]).T
    wk_t = (params["wk_in"] @ params["wk"]).T
    wv_t = (params["wv_in"] @ params["wv"]).T
    wqkv_t = jnp.concatenate([wq_t, wk_t, wv_t], axis=1).astype(matmul_dtype)  # (C, 3C)
    bqkv = jnp.concatenate(
        [params["bq_in"], params["bk_in"], params["bv_in"]]).reshape(1, 3 * C)
    bqkv = bqkv.astype(jnp.float32)

    wo_t = params["w_out"].T.astype(matmul_dtype)                              # (C, C)
    bo = params["b_out"].reshape(1, C).astype(jnp.float32)

    # fc2(fc1(x)) has no nonlinearity -> fold to a single weight.
    wf_t = (params["w_fc2"] @ params["w_fc1"]).T.astype(matmul_dtype)          # (C, C)

    xb = jnp.transpose(x, (1, 0, 2))                                           # (B, S, C)

    # Scoped-VMEM budget sized from the actual footprint (+ generous slack).
    itemsize = jnp.dtype(matmul_dtype).itemsize
    w_bytes = (3 * C * C + 2 * C * C) * itemsize + (3 * C + C) * 4
    a_bytes = 2 * 2 * S * C * 4            # x + out blocks, double-buffered, f32
    vmem_limit = int(min(max(2 * w_bytes + a_bytes + (16 << 20), 32 << 20),
                         96 << 20))

    w_qkv_spec = pl.BlockSpec((C, 3 * C), lambda b: (0, 0))
    b_qkv_spec = pl.BlockSpec((1, 3 * C), lambda b: (0, 0))
    w_spec = pl.BlockSpec((C, C), lambda b: (0, 0))
    b_spec = pl.BlockSpec((1, C), lambda b: (0, 0))
    x_spec = pl.BlockSpec((1, S, C), lambda b: (b, 0, 0))

    out = pl.pallas_call(
        partial(_transformer_layer_kernel, num_heads, head_dim, scale),
        out_shape=jax.ShapeDtypeStruct((B, S, C), x.dtype),
        grid_spec=pltpu.PrefetchScalarGridSpec(
            num_scalar_prefetch=0,
            grid=(B,),
            in_specs=[x_spec,
                      w_qkv_spec, b_qkv_spec,     # fused folded QKV weight/bias
                      w_spec, b_spec,             # attention out-projection
                      w_spec],                    # folded fc2@fc1
            out_specs=pl.BlockSpec((1, S, C), lambda b: (b, 0, 0)),
        ),
        compiler_params=pltpu.CompilerParams(
            dimension_semantics=("parallel",),
            vmem_limit_bytes=vmem_limit),
    )(xb, wqkv_t, bqkv, wo_t, bo, wf_t)

    return jnp.transpose(out, (1, 0, 2))                                       # (S, B, C)


def transformer_layer_ref(x, params, num_heads):
    """Pure-JAX reference mirroring PyTorch TransformerLayer.forward (f32)."""
    S, B, C = x.shape
    head_dim = C // num_heads

    def lin(z, w):                       # PyTorch Linear: z @ w.T
        return jnp.einsum("sbc,dc->sbd", z, w)

    q = lin(x, params["wq"])
    k = lin(x, params["wk"])
    v = lin(x, params["wv"])

    qp = lin(q, params["wq_in"]) + params["bq_in"]
    kp = lin(k, params["wk_in"]) + params["bk_in"]
    vp = lin(v, params["wv_in"]) + params["bv_in"]

    qp = qp * (1.0 / math.sqrt(head_dim))

    def split(z):                        # (S, B, C) -> (B, H, S, dh)
        return jnp.transpose(z.reshape(S, B, num_heads, head_dim), (1, 2, 0, 3))

    qh, kh, vh = split(qp), split(kp), split(vp)
    s = jnp.einsum("bhqd,bhkd->bhqk", qh, kh)
    p = jax.nn.softmax(s, axis=-1)
    o = jnp.einsum("bhqk,bhkd->bhqd", p, vh)
    o = jnp.transpose(o, (2, 0, 1, 3)).reshape(S, B, C)

    o = lin(o, params["w_out"]) + params["b_out"]
    x1 = o + x
    return lin(lin(x1, params["w_fc1"]), params["w_fc2"]) + x1


def make_params(key, c):
    keys = jax.random.split(key, 12)
    scale = 0.1
    return {
        "wq":    scale * jax.random.normal(keys[0], (c, c), jnp.float32),
        "wk":    scale * jax.random.normal(keys[1], (c, c), jnp.float32),
        "wv":    scale * jax.random.normal(keys[2], (c, c), jnp.float32),
        "wq_in": scale * jax.random.normal(keys[3], (c, c), jnp.float32),
        "wk_in": scale * jax.random.normal(keys[4], (c, c), jnp.float32),
        "wv_in": scale * jax.random.normal(keys[5], (c, c), jnp.float32),
        "bq_in": scale * jax.random.normal(keys[6], (c,), jnp.float32),
        "bk_in": scale * jax.random.normal(keys[7], (c,), jnp.float32),
        "bv_in": scale * jax.random.normal(keys[8], (c,), jnp.float32),
        "w_out": scale * jax.random.normal(keys[9], (c, c), jnp.float32),
        "b_out": scale * jax.random.normal(keys[10], (c,), jnp.float32),
        "w_fc1": scale * jax.random.normal(keys[11], (c, c), jnp.float32),
        "w_fc2": scale * jax.random.normal(jax.random.fold_in(key, 99),
                                           (c, c), jnp.float32),
    }


if __name__ == "__main__":
    SEQ, BATCH, C, NUM_HEADS = 8, 2, 32, 4

    key = jax.random.PRNGKey(0)
    kx, kp = jax.random.split(key)
    x = jax.random.normal(kx, (SEQ, BATCH, C), jnp.float32)      # (S, B, C)
    params = make_params(kp, C)

    ref = transformer_layer_ref(x, params, NUM_HEADS)

    # f32 matmul path (v5e-friendly elementwise, exact folding): tight check.
    out_f32 = jax.block_until_ready(
        transformer_layer_pallas(x, params, NUM_HEADS, matmul_dtype=jnp.float32))
    np.testing.assert_allclose(np.asarray(out_f32), np.asarray(ref),
                               rtol=1e-3, atol=1e-3)

    # bf16 matmul-input path (v6e/v7x fast path, f32 accumulation): looser check.
    out_bf16 = jax.block_until_ready(
        transformer_layer_pallas(x, params, NUM_HEADS, matmul_dtype=jnp.bfloat16))
    np.testing.assert_allclose(np.asarray(out_bf16), np.asarray(ref),
                               rtol=5e-2, atol=5e-2)

    print("KERNEL_OK")
</pallas_src>

<mosaic_0001>
module attributes {stable_mosaic.version = 11 : i64} {
  func.func @_transformer_layer_kernel(%arg0: i32, %arg1: memref<1x8x32xf32, #tpu.memory_space<vmem>>, %arg2: memref<32x96xf32, #tpu.memory_space<vmem>>, %arg3: memref<1x96xf32, #tpu.memory_space<vmem>>, %arg4: memref<32x32xf32, #tpu.memory_space<vmem>>, %arg5: memref<1x32xf32, #tpu.memory_space<vmem>>, %arg6: memref<32x32xf32, #tpu.memory_space<vmem>>, %arg7: memref<1x8x32xf32, #tpu.memory_space<vmem>>) attributes {dimension_semantics = [#tpu.dimension_semantics<parallel>], iteration_bounds = array<i64: 2>, scalar_prefetch = 0 : i64, scratch_operands = 0 : i64, tpu.core_type = #tpu.core_type<tc>, window_params = [{transform_indices = @transform_0, window_bounds = array<i64: 1, 8, 32>}, {pipeline_mode = #tpu.pipeline_mode<synchronous>, transform_indices = @transform_1, window_bounds = array<i64: 32, 96>}, {pipeline_mode = #tpu.pipeline_mode<synchronous>, transform_indices = @transform_2, window_bounds = array<i64: 1, 96>}, {pipeline_mode = #tpu.pipeline_mode<synchronous>, transform_indices = @transform_3, window_bounds = array<i64: 32, 32>}, {pipeline_mode = #tpu.pipeline_mode<synchronous>, transform_indices = @transform_4, window_bounds = array<i64: 1, 32>}, {pipeline_mode = #tpu.pipeline_mode<synchronous>, transform_indices = @transform_5, window_bounds = array<i64: 32, 32>}, {transform_indices = @transform_6, window_bounds = array<i64: 1, 8, 32>}]} {
    %c0 = arith.constant 0 : index
    %c0_0 = arith.constant 0 : index
    %c0_1 = arith.constant 0 : index
    %0 = vector.load %arg1[%c0, %c0_0, %c0_1] : memref<1x8x32xf32, #tpu.memory_space<vmem>>, vector<1x8x32xf32>
    %1 = vector.shape_cast %0 : vector<1x8x32xf32> to vector<8x32xf32>
    %c0_2 = arith.constant 0 : index
    %c0_3 = arith.constant 0 : index
    %2 = vector.load %arg2[%c0_2, %c0_3] : memref<32x96xf32, #tpu.memory_space<vmem>>, vector<32x96xf32>
    %cst = arith.constant dense<0.000000e+00> : vector<8x96xf32>
    %3 = tpu.matmul %1, %2, %cst {dimension_numbers = #tpu.dot_dimension_numbers<[1], [0], [0], [1], [0, 0, 1, 1], [], []>} : vector<8x32xf32>, vector<32x96xf32>, vector<8x96xf32> -> vector<8x96xf32>
    %c0_4 = arith.constant 0 : index
    %c0_5 = arith.constant 0 : index
    %4 = vector.load %arg3[%c0_4, %c0_5] : memref<1x96xf32, #tpu.memory_space<vmem>>, vector<1x96xf32>
    %5 = vector.broadcast %4 : vector<1x96xf32> to vector<8x96xf32>
    %6 = arith.addf %3, %5 : vector<8x96xf32>
    %7 = vector.extract_strided_slice %6 {offsets = [0, 0], sizes = [8, 32], strides = [1, 1]} : vector<8x96xf32> to vector<8x32xf32>
    %cst_6 = arith.constant 0.353553385 : f32
    %8 = vector.broadcast %cst_6 : f32 to vector<8x32xf32>
    %9 = arith.mulf %7, %8 : vector<8x32xf32>
    %10 = vector.extract_strided_slice %6 {offsets = [0, 32], sizes = [8, 32], strides = [1, 1]} : vector<8x96xf32> to vector<8x32xf32>
    %11 = vector.extract_strided_slice %6 {offsets = [0, 64], sizes = [8, 32], strides = [1, 1]} : vector<8x96xf32> to vector<8x32xf32>
    %12 = vector.shape_cast %9 : vector<8x32xf32> to vector<8x4x8xf32>
    %13 = vector.shape_cast %10 : vector<8x32xf32> to vector<8x4x8xf32>
    %14 = vector.shape_cast %11 : vector<8x32xf32> to vector<8x4x8xf32>
    "tpu.trace_start"() <{level = 10 : i32, message = "qhd,khd->hqk"}> : () -> ()
    %cst_7 = arith.constant dense<0.000000e+00> : vector<4x8x8xf32>
    %15 = tpu.matmul %12, %13, %cst_7 {dimension_numbers = #tpu.dot_dimension_numbers<[2], [2], [0], [0], [0, 1, 0, 0, 1, 0], [1], [1]>} : vector<8x4x8xf32>, vector<8x4x8xf32>, vector<4x8x8xf32> -> vector<4x8x8xf32>
    "tpu.trace_stop"() : () -> ()
    %cst_8 = arith.constant dense<0xFF800000> : vector<4x8xf32>
    %16 = vector.multi_reduction <maximumf>, %15, %cst_8 [2] : vector<4x8x8xf32> to vector<4x8xf32>
    %17 = vector.shape_cast %16 : vector<4x8xf32> to vector<4x8x1xf32>
    %18 = vector.broadcast %17 : vector<4x8x1xf32> to vector<4x8x8xf32>
    %19 = arith.subf %15, %18 : vector<4x8x8xf32>
    %20 = math.exp %19 : vector<4x8x8xf32>
    %cst_9 = arith.constant dense<0.000000e+00> : vector<4x8xf32>
    %21 = vector.multi_reduction <add>, %20, %cst_9 [2] : vector<4x8x8xf32> to vector<4x8xf32>
    %22 = vector.shape_cast %21 : vector<4x8xf32> to vector<4x8x1xf32>
    %23 = tpu.reciprocal %22 {approx = true} : vector<4x8x1xf32> -> vector<4x8x1xf32>
    %24 = vector.broadcast %23 : vector<4x8x1xf32> to vector<4x8x8xf32>
    %25 = arith.mulf %20, %24 : vector<4x8x8xf32>
    "tpu.trace_start"() <{level = 10 : i32, message = "hqk,khd->qhd"}> : () -> ()
    %cst_10 = arith.constant dense<0.000000e+00> : vector<4x8x8xf32>
    %26 = tpu.matmul %14, %25, %cst_10 {dimension_numbers = #tpu.dot_dimension_numbers<[0], [2], [2], [1], [0, 1, 0, 2, 1, 1], [1], [0]>} : vector<8x4x8xf32>, vector<4x8x8xf32>, vector<4x8x8xf32> -> vector<4x8x8xf32>
    %27 = tpu.transpose %26, [2, 0, 1] : vector<4x8x8xf32> -> vector<8x4x8xf32>
    "tpu.trace_stop"() : () -> ()
    %28 = vector.shape_cast %27 : vector<8x4x8xf32> to vector<8x32xf32>
    %c0_11 = arith.constant 0 : index
    %c0_12 = arith.constant 0 : index
    %29 = vector.load %arg4[%c0_11, %c0_12] : memref<32x32xf32, #tpu.memory_space<vmem>>, vector<32x32xf32>
    %cst_13 = arith.constant dense<0.000000e+00> : vector<8x32xf32>
    %30 = tpu.matmul %28, %29, %cst_13 {dimension_numbers = #tpu.dot_dimension_numbers<[1], [0], [0], [1], [0, 0, 1, 1], [], []>} : vector<8x32xf32>, vector<32x32xf32>, vector<8x32xf32> -> vector<8x32xf32>
    %c0_14 = arith.constant 0 : index
    %c0_15 = arith.constant 0 : index
    %31 = vector.load %arg5[%c0_14, %c0_15] : memref<1x32xf32, #tpu.memory_space<vmem>>, vector<1x32xf32>
    %32 = vector.broadcast %31 : vector<1x32xf32> to vector<8x32xf32>
    %33 = arith.addf %30, %32 : vector<8x32xf32>
    %34 = arith.addf %33, %1 : vector<8x32xf32>
    %c0_16 = arith.constant 0 : index
    %c0_17 = arith.constant 0 : index
    %35 = vector.load %arg6[%c0_16, %c0_17] : memref<32x32xf32, #tpu.memory_space<vmem>>, vector<32x32xf32>
    %cst_18 = arith.constant dense<0.000000e+00> : vector<8x32xf32>
    %36 = tpu.matmul %34, %35, %cst_18 {dimension_numbers = #tpu.dot_dimension_numbers<[1], [0], [0], [1], [0, 0, 1, 1], [], []>} : vector<8x32xf32>, vector<32x32xf32>, vector<8x32xf32> -> vector<8x32xf32>
    %37 = arith.addf %36, %34 : vector<8x32xf32>
    %c0_19 = arith.constant 0 : index
    %c0_20 = arith.constant 0 : index
    %c0_21 = arith.constant 0 : index
    %38 = vector.load %arg7[%c0_19, %c0_20, %c0_21] : memref<1x8x32xf32, #tpu.memory_space<vmem>>, vector<1x8x32xf32>
    %39 = vector.shape_cast %38 : vector<1x8x32xf32> to vector<8x32xf32>
    %40 = vector.shape_cast %37 : vector<8x32xf32> to vector<1x8x32xf32>
    tpu.vector_store %arg7[%c0_19, %c0_20, %c0_21], %40 {strides = array<i32>} : memref<1x8x32xf32, #tpu.memory_space<vmem>>, vector<1x8x32xf32>,
    return
  }
  func.func @transform_0(%arg0: i32) -> (i32, i32, i32) {
    %c0_i32 = arith.constant 0 : i32
    %c0_i32_0 = arith.constant 0 : i32
    %c0_i32_1 = arith.constant 0 : i32
    return %arg0, %c0_i32, %c0_i32_0 : i32, i32, i32
  }
  func.func @transform_1(%arg0: i32) -> (i32, i32) {
    %c0_i32 = arith.constant 0 : i32
    %c0_i32_0 = arith.constant 0 : i32
    %c0_i32_1 = arith.constant 0 : i32
    return %c0_i32, %c0_i32_0 : i32, i32
  }
  func.func @transform_2(%arg0: i32) -> (i32, i32) {
    %c0_i32 = arith.constant 0 : i32
    %c0_i32_0 = arith.constant 0 : i32
    %c0_i32_1 = arith.constant 0 : i32
    return %c0_i32, %c0_i32_0 : i32, i32
  }
  func.func @transform_3(%arg0: i32) -> (i32, i32) {
    %c0_i32 = arith.constant 0 : i32
    %c0_i32_0 = arith.constant 0 : i32
    %c0_i32_1 = arith.constant 0 : i32
    return %c0_i32, %c0_i32_0 : i32, i32
  }
  func.func @transform_4(%arg0: i32) -> (i32, i32) {
    %c0_i32 = arith.constant 0 : i32
    %c0_i32_0 = arith.constant 0 : i32
    %c0_i32_1 = arith.constant 0 : i32
    return %c0_i32, %c0_i32_0 : i32, i32
  }
  func.func @transform_5(%arg0: i32) -> (i32, i32) {
    %c0_i32 = arith.constant 0 : i32
    %c0_i32_0 = arith.constant 0 : i32
    %c0_i32_1 = arith.constant 0 : i32
    return %c0_i32, %c0_i32_0 : i32, i32
  }
  func.func @transform_6(%arg0: i32) -> (i32, i32, i32) {
    %c0_i32 = arith.constant 0 : i32
    %c0_i32_0 = arith.constant 0 : i32
    %c0_i32_1 = arith.constant 0 : i32
    return %arg0, %c0_i32, %c0_i32_0 : i32, i32, i32
  }
}

</mosaic_0001>

<llo_original>
// kernel: tpu_custom_call.1
$region0: #{tpu_custom_call.1}
  #allocation0 [shape = 'u32[]', space=smem, size = 0x4, offset = 0x4, fixed_abs, tag = 'smem constant byte address 0x4 - core index']
  #allocation1 [shape = 'u32[72,128]{1,0:T(1,128)}', space=vmem, size = 0x9000, scoped, tag = 'internal scratch']
  %s0 = inlined_call_operand.hbm [shape: f32[2,8,32], index: 0, kind: input, shape index: {}]
  %s1 = inlined_call_operand.hbm [shape: f32[32,96], index: 1, kind: input, shape index: {}]
  %s2 = inlined_call_operand.vmem [shape: f32[1,96], index: 2, kind: input, shape index: {}]
  %s3 = inlined_call_operand.hbm [shape: f32[32,32], index: 3, kind: input, shape index: {}]
  %s4 = inlined_call_operand.vmem [shape: f32[1,32], index: 4, kind: input, shape index: {}]
  %s5 = inlined_call_operand.hbm [shape: f32[32,32], index: 5, kind: input, shape index: {}]
  %s6 = inlined_call_operand.hbm [shape: f32[2,8,32], index: 6, kind: output, shape index: {}]
  %s7 = sld [smem:[#allocation0]]
  $region73: #{tpu_custom_call.1} parent=0
    _
  %s9 = ssub.s32 1, %s7
  %s10 = scalar_select 0, %s9, %s7
  $region1: #{tpu_custom_call.1} parent=0
    #allocation2 [shape = 'u8[8192]{0}', space=vmem, size = 0x2000, scoped, tag = 'input window, operand 0']
    #allocation3 [shape = 's32[2]{0}', space=sflag, size = 0x8, scoped, tag = 'scoped memory for tpu_custom_call.1']
    #allocation4 [shape = 's32[2]{0}', space=sflag, size = 0x8, scoped, tag = 'scoped memory for tpu_custom_call.1']
    #allocation5 [shape = 'u8[16384]{0}', space=vmem, size = 0x4000, scoped, tag = 'input window, operand 1, single buffered']
    #allocation6 [shape = 's32[1]{0}', space=sflag, size = 0x4, scoped, tag = 'scoped memory for tpu_custom_call.1']
    #allocation7 [shape = 'u8[16384]{0}', space=vmem, size = 0x4000, scoped, tag = 'input window, operand 3, single buffered']
    #allocation8 [shape = 'u8[16384]{0}', space=vmem, size = 0x4000, scoped, tag = 'input window, operand 5, single buffered']
    #allocation9 [shape = 's32[1]{0}', space=sflag, size = 0x4, scoped, tag = 'scoped memory for tpu_custom_call.1']
    #allocation10 [shape = 'u8[8192]{0}', space=vmem, size = 0x2000, scoped, tag = 'output window, operand 0']
    %11 = vsyncpa [#allocation3], 0
    %s12 = scalar_lea.sflag [#allocation3], 1
    %13 = vsyncpa %s12, 0
    %14 = vsyncpa [#allocation6], 0
    %15 = vsyncpa [#allocation9], 0
    %16 = vsyncpa [#allocation4], 0
    %s17 = scalar_lea.sflag [#allocation4], 1
    %18 = vsyncpa %s17, 0
    loop: start=0, step=1, limit=4
    $region2: #{tpu_custom_call.1} parent=1 // loop_pre_header
      _
    $region3: #{tpu_custom_call.1} parent=1 // loop_header
      %s20 = sphi 0, %s24
      %p21 = scmp.ge.s32.totalorder %s20, 4
      %s30 = sphi 0, %s32
      %s33 = sphi 0, %s30
      %s34 = sphi 0, %s33
      %s50 = sphi 0, %s34
      %s54 = sphi 0, %s54
      %s56 = sphi 0, %s54
      %s57 = sphi 0, %s56
      %s71 = sphi 0, %s57
      %s75 = sphi 0, %s75
      %s77 = sphi 0, %s75
      %s78 = sphi 0, %s77
      %s92 = sphi 0, %s78
      %s96 = sphi 0, %s96
      %s98 = sphi 0, %s96
      %s99 = sphi 0, %s98
      %s113 = sphi 0, %s99
      %s117 = sphi 0, %s117
      %s119 = sphi 0, %s117
      %s120 = sphi 0, %s119
      %s134 = sphi 0, %s120
      %s138 = sphi 0, %s138
      %s140 = sphi 0, %s138
      %s141 = sphi 0, %s140
      %s155 = sphi 0, %s141
      %s161 = sphi 0, %s163
      %s164 = sphi 0, %s161
      %s165 = sphi 0, %s164
      %s181 = sphi 0, %s165
    $region4: #{tpu_custom_call.1} parent=1 // loop_header_branch
      %23 = sbr.rel (%p21) target = $region8
    $region5: #{tpu_custom_call.1} parent=1 // loop_body
      %s25 = ssub.s32 %s20, 1
      %s26 = ssub.s32 %s20, 2
      %s27 = sadd.s32 %s20, 1
      %s28 = ssub.s32 %s20, %s27
      %p29 = scmp.eq.s32.totalorder %s28, 0
      %s31 = sadd.s32 %s30, 1
      %s32 = scalar_select %p29, %s30, %s31
      %p35 = pneg %p29
      %p36 = scmp.eq.s32.totalorder %s20, 1
      %p37 = por %p35, %p36
      %p38 = scmp.ne.s32.totalorder %s30, %s33
      %p39 = scmp.eq.s32.totalorder %s20, 0
      %p40 = por %p38, %p39
      %p41 = scmp.ne.s32.totalorder %s30, %s33
      %p42 = scmp.eq.s32.totalorder %s25, 1
      %p43 = por %p41, %p42
      %p44 = scmp.ne.s32.totalorder %s33, %s34
      %p45 = scmp.eq.s32.totalorder %s25, 0
      %p46 = por %p44, %p45
      %p47 = scmp.ne.s32.totalorder %s33, %s34
      %p48 = scmp.eq.s32.totalorder %s26, 1
      %p49 = por %p47, %p48
      %p51 = scmp.ne.s32.totalorder %s34, %s50
      %p52 = scmp.eq.s32.totalorder %s26, 0
      %p53 = por %p51, %p52
      %s55 = sadd.s32 %s54, 1
      %p58 = scmp.eq.s32.totalorder %s20, 1
      %p59 = scmp.ne.s32.totalorder %s54, %s56
      %p60 = scmp.eq.s32.totalorder %s20, 0
      %p61 = por %p59, %p60
      %p62 = scmp.ne.s32.totalorder %s54, %s56
      %p63 = scmp.eq.s32.totalorder %s25, 1
      %p64 = por %p62, %p63
      %p65 = scmp.ne.s32.totalorder %s56, %s57
      %p66 = scmp.eq.s32.totalorder %s25, 0
      %p67 = por %p65, %p66
      %p68 = scmp.ne.s32.totalorder %s56, %s57
      %p69 = scmp.eq.s32.totalorder %s26, 1
      %p70 = por %p68, %p69
      %p72 = scmp.ne.s32.totalorder %s57, %s71
      %p73 = scmp.eq.s32.totalorder %s26, 0
      %p74 = por %p72, %p73
      %s76 = sadd.s32 %s75, 1
      %p79 = scmp.eq.s32.totalorder %s20, 1
      %p80 = scmp.ne.s32.totalorder %s75, %s77
      %p81 = scmp.eq.s32.totalorder %s20, 0
      %p82 = por %p80, %p81
      %p83 = scmp.ne.s32.totalorder %s75, %s77
      %p84 = scmp.eq.s32.totalorder %s25, 1
      %p85 = por %p83, %p84
      %p86 = scmp.ne.s32.totalorder %s77, %s78
      %p87 = scmp.eq.s32.totalorder %s25, 0
      %p88 = por %p86, %p87
      %p89 = scmp.ne.s32.totalorder %s77, %s78
      %p90 = scmp.eq.s32.totalorder %s26, 1
      %p91 = por %p89, %p90
      %p93 = scmp.ne.s32.totalorder %s78, %s92
      %p94 = scmp.eq.s32.totalorder %s26, 0
      %p95 = por %p93, %p94
      %s97 = sadd.s32 %s96, 1
      %p100 = scmp.eq.s32.totalorder %s20, 1
      %p101 = scmp.ne.s32.totalorder %s96, %s98
      %p102 = scmp.eq.s32.totalorder %s20, 0
      %p103 = por %p101, %p102
      %p104 = scmp.ne.s32.totalorder %s96, %s98
      %p105 = scmp.eq.s32.totalorder %s25, 1
      %p106 = por %p104, %p105
      %p107 = scmp.ne.s32.totalorder %s98, %s99
      %p108 = scmp.eq.s32.totalorder %s25, 0
      %p109 = por %p107, %p108
      %p110 = scmp.ne.s32.totalorder %s98, %s99
      %p111 = scmp.eq.s32.totalorder %s26, 1
      %p112 = por %p110, %p111
      %p114 = scmp.ne.s32.totalorder %s99, %s113
      %p115 = scmp.eq.s32.totalorder %s26, 0
      %p116 = por %p114, %p115
      %s118 = sadd.s32 %s117, 1
      %p121 = scmp.eq.s32.totalorder %s20, 1
      %p122 = scmp.ne.s32.totalorder %s117, %s119
      %p123 = scmp.eq.s32.totalorder %s20, 0
      %p124 = por %p122, %p123
      %p125 = scmp.ne.s32.totalorder %s117, %s119
      %p126 = scmp.eq.s32.totalorder %s25, 1
      %p127 = por %p125, %p126
      %p128 = scmp.ne.s32.totalorder %s119, %s120
      %p129 = scmp.eq.s32.totalorder %s25, 0
      %p130 = por %p128, %p129
      %p131 = scmp.ne.s32.totalorder %s119, %s120
      %p132 = scmp.eq.s32.totalorder %s26, 1
      %p133 = por %p131, %p132
      %p135 = scmp.ne.s32.totalorder %s120, %s134
      %p136 = scmp.eq.s32.totalorder %s26, 0
      %p137 = por %p135, %p136
      %s139 = sadd.s32 %s138, 1
      %p142 = scmp.eq.s32.totalorder %s20, 1
      %p143 = scmp.ne.s32.totalorder %s138, %s140
      %p144 = scmp.eq.s32.totalorder %s20, 0
      %p145 = por %p143, %p144
      %p146 = scmp.ne.s32.totalorder %s138, %s140
      %p147 = scmp.eq.s32.totalorder %s25, 1
      %p148 = por %p146, %p147
      %p149 = scmp.ne.s32.totalorder %s140, %s141
      %p150 = scmp.eq.s32.totalorder %s25, 0
      %p151 = por %p149, %p150
      %p152 = scmp.ne.s32.totalorder %s140, %s141
      %p153 = scmp.eq.s32.totalorder %s26, 1
      %p154 = por %p152, %p153
      %p156 = scmp.ne.s32.totalorder %s141, %s155
      %p157 = scmp.eq.s32.totalorder %s26, 0
      %p158 = por %p156, %p157
      %s159 = ssub.s32 %s20, %s27
      %p160 = scmp.eq.s32.totalorder %s159, 0
      %s162 = sadd.s32 %s161, 1
      %s163 = scalar_select %p160, %s161, %s162
      %p166 = pneg %p160
      %p167 = scmp.eq.s32.totalorder %s20, 1
      %p168 = por %p166, %p167
      %p169 = scmp.ne.s32.totalorder %s161, %s164
      %p170 = scmp.eq.s32.totalorder %s20, 0
      %p171 = por %p169, %p170
      %p172 = scmp.ne.s32.totalorder %s161, %s164
      %p173 = scmp.eq.s32.totalorder %s25, 1
      %p174 = por %p172, %p173
      %p175 = scmp.ne.s32.totalorder %s164, %s165
      %p176 = scmp.eq.s32.totalorder %s25, 0
      %p177 = por %p175, %p176
      %p178 = scmp.ne.s32.totalorder %s164, %s165
      %p179 = scmp.eq.s32.totalorder %s26, 1
      %p180 = por %p178, %p179
      %p182 = scmp.ne.s32.totalorder %s165, %s181
      %p183 = scmp.eq.s32.totalorder %s26, 0
      %p184 = por %p182, %p183
      %p185 = scmp.le.s32.totalorder 1, %s20
      %p186 = scmp.lt.s32.totalorder %s20, 3
      %p187 = pnand %p185, %p186
      %p188 = pneg %p187
      // Predicated region
      $region9: #{tpu_custom_call.1} parent=5 // pred_check
        _
      $region10: #{tpu_custom_call.1} parent=5 // pred_check_branch
        %190 = sbr.rel (%p187) target = $region12
      $region11: #{tpu_custom_call.1} parent=5 // pred_region
        %s191 = ssub.s32 %s20, 1
        // Predicated region
        $region13: #{tpu_custom_call.1} parent=11 // pred_check
          %p192 = pneg %p67
        $region14: #{tpu_custom_call.1} parent=11 // pred_check_branch
          %194 = sbr.rel (%p192) target = $region16
        $region15: #{tpu_custom_call.1} parent=11 // pred_region
          %196 = vsyncadd [#allocation6], 0
          %s197 = sshll.u32 %s1, 4
          %s198 = int_to_ptr.hbm [resolvable:$true] %s197
          %s199 = sshll.u32 [#allocation5], 4
          %s200 = int_to_ptr.vmem [resolvable:$true] %s199
          %205 = dma.hbm_to_vmem [thread:$0]  %s198, 512, %s200, [#allocation6], 128, 128, 8
        $region16: #{tpu_custom_call.1} parent=11 // pred_fallthru
          _
        // Predicated region
        $region17: #{tpu_custom_call.1} parent=11 // pred_check
          %p206 = pneg %p88
        $region18: #{tpu_custom_call.1} parent=11 // pred_check_branch
          %208 = sbr.rel (%p206) target = $region20
        $region19: #{tpu_custom_call.1} parent=11 // pred_region
          _
        $region20: #{tpu_custom_call.1} parent=11 // pred_fallthru
          _
        // Predicated region
        $region21: #{tpu_custom_call.1} parent=11 // pred_check
          %p209 = pneg %p109
        $region22: #{tpu_custom_call.1} parent=11 // pred_check_branch
          %211 = sbr.rel (%p209) target = $region24
        $region23: #{tpu_custom_call.1} parent=11 // pred_region
          %213 = vsyncadd [#allocation6], 0
          %s214 = sshll.u32 %s3, 4
          %s215 = int_to_ptr.hbm [resolvable:$true] %s214
          %s216 = sshll.u32 [#allocation7], 4
          %s217 = int_to_ptr.vmem [resolvable:$true] %s216
          %222 = dma.hbm_to_vmem [thread:$0]  %s215, 512, %s217, [#allocation6], 128, 128, 8
        $region24: #{tpu_custom_call.1} parent=11 // pred_fallthru
          _
        // Predicated region
        $region25: #{tpu_custom_call.1} parent=11 // pred_check
          %p223 = pneg %p130
        $region26: #{tpu_custom_call.1} parent=11 // pred_check_branch
          %225 = sbr.rel (%p223) target = $region28
        $region27: #{tpu_custom_call.1} parent=11 // pred_region
          _
        $region28: #{tpu_custom_call.1} parent=11 // pred_fallthru
          _
        // Predicated region
        $region29: #{tpu_custom_call.1} parent=11 // pred_check
          %p226 = pneg %p151
        $region30: #{tpu_custom_call.1} parent=11 // pred_check_branch
          %228 = sbr.rel (%p226) target = $region32
        $region31: #{tpu_custom_call.1} parent=11 // pred_region
          %230 = vsyncadd [#allocation9], 0
          %s231 = sshll.u32 %s5, 4
          %s232 = int_to_ptr.hbm [resolvable:$true] %s231
          %s233 = sshll.u32 [#allocation8], 4
          %s234 = int_to_ptr.vmem [resolvable:$true] %s233
          %239 = dma.hbm_to_vmem [thread:$0]  %s232, 512, %s234, [#allocation9], 128, 128, 8
        $region32: #{tpu_custom_call.1} parent=11 // pred_fallthru
          _
      $region12: #{tpu_custom_call.1} parent=5 // pred_fallthru
        _
      %p240 = scmp.lt.s32.totalorder %s20, 2
      // Predicated region
      $region33: #{tpu_custom_call.1} parent=5 // pred_check
        %p241 = pneg %p240
      $region34: #{tpu_custom_call.1} parent=5 // pred_check_branch
        %243 = sbr.rel (%p241) target = $region36
      $region35: #{tpu_custom_call.1} parent=5 // pred_region
        // Predicated region
        $region37: #{tpu_custom_call.1} parent=35 // pred_check
          %p244 = pneg %p40
        $region38: #{tpu_custom_call.1} parent=35 // pred_check_branch
          %246 = sbr.rel (%p244) target = $region40
        $region39: #{tpu_custom_call.1} parent=35 // pred_region
          %s247 = sand.u32 %s30, 1
          %s248 = scalar_lea.sflag [#allocation3], %s247
          %s249 = sand.u32 %s30, 1
          %s250 = smul.addr %s249, 8
          %s251 = scalar_lea.vmem [#allocation2], %s250
          %253 = vsyncadd %s248, 0
          %s254 = smul.addr %s20, 8
          %s255 = scalar_lea.hbm %s0, %s254
          %s257 = sshll.u32 %s255, 4
          %s258 = int_to_ptr.hbm [resolvable:$true] %s257
          %s259 = sshll.u32 %s251, 4
          %s260 = int_to_ptr.vmem [resolvable:$true] %s259
          %262 = dma.hbm_to_vmem [thread:$0]  %s258, 128, %s260, %s248
        $region40: #{tpu_custom_call.1} parent=35 // pred_fallthru
          _
      $region36: #{tpu_custom_call.1} parent=5 // pred_fallthru
        _
      %p263 = scmp.le.s32.totalorder 1, %s20
      %p264 = scmp.lt.s32.totalorder %s20, 3
      %p265 = pnand %p263, %p264
      %p266 = pneg %p265
      // Predicated region
      $region41: #{tpu_custom_call.1} parent=5 // pred_check
        _
      $region42: #{tpu_custom_call.1} parent=5 // pred_check_branch
        %268 = sbr.rel (%p265) target = $region44
      $region43: #{tpu_custom_call.1} parent=5 // pred_region
        %s269 = ssub.s32 %s20, 1
        %s270 = sand.u32 %s33, 1
        %s271 = scalar_lea.sflag [#allocation3], %s270
        %s272 = sand.u32 %s33, 1
        %s273 = smul.addr %s272, 8
        %s274 = scalar_lea.vmem [#allocation2], %s273
        // Predicated region
        $region45: #{tpu_custom_call.1} parent=43 // pred_check
          %p275 = pneg %p46
        $region46: #{tpu_custom_call.1} parent=43 // pred_check_branch
          %277 = sbr.rel (%p275) target = $region48
        $region47: #{tpu_custom_call.1} parent=43 // pred_region
          %279 = dma.done %s271, 128
        $region48: #{tpu_custom_call.1} parent=43 // pred_fallthru
          _
        // Predicated region
        $region49: #{tpu_custom_call.1} parent=43 // pred_check
          %p280 = pneg %p67
        $region50: #{tpu_custom_call.1} parent=43 // pred_check_branch
          %282 = sbr.rel (%p280) target = $region52
        $region51: #{tpu_custom_call.1} parent=43 // pred_region
          %284 = dma.done [#allocation6], 512
        $region52: #{tpu_custom_call.1} parent=43 // pred_fallthru
          _
        // Predicated region
        $region53: #{tpu_custom_call.1} parent=43 // pred_check
          %p285 = pneg %p109
        $region54: #{tpu_custom_call.1} parent=43 // pred_check_branch
          %287 = sbr.rel (%p285) target = $region56
        $region55: #{tpu_custom_call.1} parent=43 // pred_region
          %289 = dma.done [#allocation6], 512
        $region56: #{tpu_custom_call.1} parent=43 // pred_fallthru
          _
        // Predicated region
        $region57: #{tpu_custom_call.1} parent=43 // pred_check
          %p290 = pneg %p151
        $region58: #{tpu_custom_call.1} parent=43 // pred_check_branch
          %292 = sbr.rel (%p290) target = $region60
        $region59: #{tpu_custom_call.1} parent=43 // pred_region
          %294 = dma.done [#allocation9], 512
        $region60: #{tpu_custom_call.1} parent=43 // pred_fallthru
          _
        %s295 = sand.u32 %s33, 1
        %s296 = scalar_lea.sflag [#allocation3], %s295
        %s297 = sand.u32 %s33, 1
        %s298 = smul.addr %s297, 8
        %s299 = scalar_lea.vmem [#allocation2], %s298
        %p300 = pneg %p46
        %p301 = pneg %p43
        %p302 = pneg %p67
        %p303 = pneg %p64
        %p304 = pneg %p88
        %p305 = pneg %p85
        %p306 = pneg %p109
        %p307 = pneg %p106
        %p308 = pneg %p130
        %p309 = pneg %p127
        %p310 = pneg %p151
        %p311 = pneg %p148
        %p312 = pneg %p177
        %p313 = pneg %p174
        %s314 = sand.u32 %s164, 1
        %s315 = scalar_lea.sflag [#allocation4], %s314
        %s316 = sand.u32 %s164, 1
        %s317 = smul.addr %s316, 8
        %s318 = scalar_lea.vmem [#allocation10], %s317
        %v319 = vld [vmem:[%s274] sm:$0xff]
        %v320 = vld [vmem:[#allocation5] sm:$0xff]
        %v321 = vld [vmem:[#allocation5 + $0x8] sm:$0xff]
        %v322 = vld [vmem:[#allocation5 + $0x10] sm:$0xff]
        %v323 = vld [vmem:[#allocation5 + $0x18] sm:$0xff]
        %v324 = vld [vmem:[%s2] sm:$0x1]
        %v326 = vperm.slane %v324, 0
        %vm328 = vcmask 261120
        %v330 = vsel %vm328, %v319, 0
        %332 = vmatpush.msra.mxu0 0.0
        %333 = vmatpush.msra.mxu0 0.0
        %334 = vmatpush.msra.mxu0 0.0
        %335 = vmatpush.msra.mxu0 0.0
        %336 = vmatpush.msra.mxu0 0.0
        %337 = vmatpush.msra.mxu0 0.0
        %338 = vmatpush.msra.mxu0 0.0
        %339 = vmatpush.msra.mxu0 0.0
        %340 = vmatpush.msra.mxu0 0.0
        %341 = vmatpush.msra.mxu0 0.0
        %342 = vmatpush.msra.mxu0 0.0
        %343 = vmatpush.msra.mxu0 0.0
        %344 = vmatpush.msra.mxu0 %v323
        %345 = vmatpush.msra.mxu0 %v322
        %346 = vmatpush.msra.mxu0 %v321
        %347 = vmatpush.msra.mxu0 %v320
        %348 = vmatmul.f32.gmra.mxu0 %v330
        %v349 = vpop.f32.mrf.mxu0
        %v350 = vadd.f32 %v326, %v349
        %351 = vdwg.mxu0
        %v352 = vmul.f32 %v350, 0.35355338
        %354 = vrot.lane.b32.xlu0 %v352, 120
        %v355 = vpop.permute.xlu0 %354
        %356 = vrot.lane.b32.xlu0 %v352, 112
        %v357 = vpop.permute.xlu0 %356
        %358 = vrot.lane.b32.xlu0 %v352, 104
        %v359 = vpop.permute.xlu0 %358
        %361 = vrot.lane.b32.xlu0 %v350, 120
        %v362 = vpop.permute.xlu0 %361
        %363 = vrot.lane.b32.xlu0 %v350, 112
        %v364 = vpop.permute.xlu0 %363
        %365 = vrot.lane.b32.xlu0 %v350, 104
        %v366 = vpop.permute.xlu0 %365
        %367 = vrot.lane.b32.xlu0 %v350, 96
        %v368 = vpop.permute.xlu0 %367
        %369 = vrot.lane.b32.xlu0 %v362, 96
        %v370 = vpop.permute.xlu0 %369
        %371 = vrot.lane.b32.xlu0 %v364, 96
        %v372 = vpop.permute.xlu0 %371
        %373 = vrot.lane.b32.xlu0 %v366, 96
        %v374 = vpop.permute.xlu0 %373
        %379 = vxpose.xlu0.b32.start [1/16] %v368, 128
        %380 = vxpose.xlu0.b32.cont [2/16] 0.0, 128
        %381 = vxpose.xlu0.b32.cont [3/16] 0.0, 128
        %382 = vxpose.xlu0.b32.cont [4/16] 0.0, 128
        %383 = vxpose.xlu0.b32.cont [5/16] 0.0, 128
        %384 = vxpose.xlu0.b32.cont [6/16] 0.0, 128
        %385 = vxpose.xlu0.b32.cont [7/16] 0.0, 128
        %386 = vxpose.xlu0.b32.cont [8/16] 0.0, 128
        %387 = vxpose.xlu0.b32.cont [9/16] 0.0, 128
        %388 = vxpose.xlu0.b32.cont [10/16] 0.0, 128
        %389 = vxpose.xlu0.b32.cont [11/16] 0.0, 128
        %390 = vxpose.xlu0.b32.cont [12/16] 0.0, 128
        %391 = vxpose.xlu0.b32.cont [13/16] 0.0, 128
        %392 = vxpose.xlu0.b32.cont [14/16] 0.0, 128
        %393 = vxpose.xlu0.b32.cont [15/16] 0.0, 128
        %394 = vxpose.xlu0.b32.end [16/16] 0.0, 128
        %v395 = vpop.trf.xlu0
        %v396 = vpop.trf.xlu0
        %v397 = vpop.trf.xlu0
        %v398 = vpop.trf.xlu0
        %v399 = vpop.trf.xlu0
        %v400 = vpop.trf.xlu0
        %v401 = vpop.trf.xlu0
        %v402 = vpop.trf.xlu0
        %v403 = vpop.trf.xlu0
        %v404 = vpop.trf.xlu0
        %v405 = vpop.trf.xlu0
        %v406 = vpop.trf.xlu0
        %v407 = vpop.trf.xlu0
        %v408 = vpop.trf.xlu0
        %v409 = vpop.trf.xlu0
        %v410 = vpop.trf.xlu0
        %411 = vxpose.xlu0.b32.start [1/16] %v370, 128
        %412 = vxpose.xlu0.b32.cont [2/16] 0.0, 128
        %413 = vxpose.xlu0.b32.cont [3/16] 0.0, 128
        %414 = vxpose.xlu0.b32.cont [4/16] 0.0, 128
        %415 = vxpose.xlu0.b32.cont [5/16] 0.0, 128
        %416 = vxpose.xlu0.b32.cont [6/16] 0.0, 128
        %417 = vxpose.xlu0.b32.cont [7/16] 0.0, 128
        %418 = vxpose.xlu0.b32.cont [8/16] 0.0, 128
        %419 = vxpose.xlu0.b32.cont [9/16] 0.0, 128
        %420 = vxpose.xlu0.b32.cont [10/16] 0.0, 128
        %421 = vxpose.xlu0.b32.cont [11/16] 0.0, 128
        %422 = vxpose.xlu0.b32.cont [12/16] 0.0, 128
        %423 = vxpose.xlu0.b32.cont [13/16] 0.0, 128
        %424 = vxpose.xlu0.b32.cont [14/16] 0.0, 128
        %425 = vxpose.xlu0.b32.cont [15/16] 0.0, 128
        %426 = vxpose.xlu0.b32.end [16/16] 0.0, 128
        %v427 = vpop.trf.xlu0
        %v428 = vpop.trf.xlu0
        %v429 = vpop.trf.xlu0
        %v430 = vpop.trf.xlu0
        %v431 = vpop.trf.xlu0
        %v432 = vpop.trf.xlu0
        %v433 = vpop.trf.xlu0
        %v434 = vpop.trf.xlu0
        %v435 = vpop.trf.xlu0
        %v436 = vpop.trf.xlu0
        %v437 = vpop.trf.xlu0
        %v438 = vpop.trf.xlu0
        %v439 = vpop.trf.xlu0
        %v440 = vpop.trf.xlu0
        %v441 = vpop.trf.xlu0
        %v442 = vpop.trf.xlu0
        %443 = vxpose.xlu0.b32.start [1/16] %v372, 128
        %444 = vxpose.xlu0.b32.cont [2/16] 0.0, 128
        %445 = vxpose.xlu0.b32.cont [3/16] 0.0, 128
        %446 = vxpose.xlu0.b32.cont [4/16] 0.0, 128
        %447 = vxpose.xlu0.b32.cont [5/16] 0.0, 128
        %448 = vxpose.xlu0.b32.cont [6/16] 0.0, 128
        %449 = vxpose.xlu0.b32.cont [7/16] 0.0, 128
        %450 = vxpose.xlu0.b32.cont [8/16] 0.0, 128
        %451 = vxpose.xlu0.b32.cont [9/16] 0.0, 128
        %452 = vxpose.xlu0.b32.cont [10/16] 0.0, 128
        %453 = vxpose.xlu0.b32.cont [11/16] 0.0, 128
        %454 = vxpose.xlu0.b32.cont [12/16] 0.0, 128
        %455 = vxpose.xlu0.b32.cont [13/16] 0.0, 128
        %456 = vxpose.xlu0.b32.cont [14/16] 0.0, 128
        %457 = vxpose.xlu0.b32.cont [15/16] 0.0, 128
        %458 = vxpose.xlu0.b32.end [16/16] 0.0, 128
        %v459 = vpop.trf.xlu0
        %v460 = vpop.trf.xlu0
        %v461 = vpop.trf.xlu0
        %v462 = vpop.trf.xlu0
        %v463 = vpop.trf.xlu0
        %v464 = vpop.trf.xlu0
        %v465 = vpop.trf.xlu0
        %v466 = vpop.trf.xlu0
        %v467 = vpop.trf.xlu0
        %v468 = vpop.trf.xlu0
        %v469 = vpop.trf.xlu0
        %v470 = vpop.trf.xlu0
        %v471 = vpop.trf.xlu0
        %v472 = vpop.trf.xlu0
        %v473 = vpop.trf.xlu0
        %v474 = vpop.trf.xlu0
        %475 = vxpose.xlu0.b32.start [1/16] %v374, 128
        %476 = vxpose.xlu0.b32.cont [2/16] 0.0, 128
        %477 = vxpose.xlu0.b32.cont [3/16] 0.0, 128
        %478 = vxpose.xlu0.b32.cont [4/16] 0.0, 128
        %479 = vxpose.xlu0.b32.cont [5/16] 0.0, 128
        %480 = vxpose.xlu0.b32.cont [6/16] 0.0, 128
        %481 = vxpose.xlu0.b32.cont [7/16] 0.0, 128
        %482 = vxpose.xlu0.b32.cont [8/16] 0.0, 128
        %483 = vxpose.xlu0.b32.cont [9/16] 0.0, 128
        %484 = vxpose.xlu0.b32.cont [10/16] 0.0, 128
        %485 = vxpose.xlu0.b32.cont [11/16] 0.0, 128
        %486 = vxpose.xlu0.b32.cont [12/16] 0.0, 128
        %487 = vxpose.xlu0.b32.cont [13/16] 0.0, 128
        %488 = vxpose.xlu0.b32.cont [14/16] 0.0, 128
        %489 = vxpose.xlu0.b32.cont [15/16] 0.0, 128
        %490 = vxpose.xlu0.b32.end [16/16] 0.0, 128
        %v491 = vpop.trf.xlu0
        %v492 = vpop.trf.xlu0
        %v493 = vpop.trf.xlu0
        %v494 = vpop.trf.xlu0
        %v495 = vpop.trf.xlu0
        %v496 = vpop.trf.xlu0
        %v497 = vpop.trf.xlu0
        %v498 = vpop.trf.xlu0
        %v499 = vpop.trf.xlu0
        %v500 = vpop.trf.xlu0
        %v501 = vpop.trf.xlu0
        %v502 = vpop.trf.xlu0
        %v503 = vpop.trf.xlu0
        %v504 = vpop.trf.xlu0
        %v505 = vpop.trf.xlu0
        %v506 = vpop.trf.xlu0
        %vm507 = vcmask 64512
        %v508 = vsel %vm507, %v352, 0
        %510 = vmatpush.msra.mxu0 0.0
        %511 = vmatpush.msra.mxu0 0.0
        %512 = vmatpush.msra.mxu0 0.0
        %513 = vmatpush.msra.mxu0 0.0
        %514 = vmatpush.msra.mxu0 0.0
        %515 = vmatpush.msra.mxu0 0.0
        %516 = vmatpush.msra.mxu0 0.0
        %517 = vmatpush.msra.mxu0 0.0
        %518 = vmatpush.msra.mxu0 0.0
        %519 = vmatpush.msra.mxu0 0.0
        %520 = vmatpush.msra.mxu0 0.0
        %521 = vmatpush.msra.mxu0 0.0
        %522 = vmatpush.msra.mxu0 0.0
        %523 = vmatpush.msra.mxu0 0.0
        %524 = vmatpush.msra.mxu0 0.0
        %525 = vmatpush.msra.mxu0 %v395
        %526 = vmatmul.f32.gmra.mxu0 %v508
        %v527 = vpop.f32.mrf.mxu0
        %v528 = vadd.f32 0.0, %v527
        %529 = vdwg.mxu0
        %v530 = vsel %vm507, %v355, 0
        %532 = vmatpush.msra.mxu0 0.0
        %533 = vmatpush.msra.mxu0 0.0
        %534 = vmatpush.msra.mxu0 0.0
        %535 = vmatpush.msra.mxu0 0.0
        %536 = vmatpush.msra.mxu0 0.0
        %537 = vmatpush.msra.mxu0 0.0
        %538 = vmatpush.msra.mxu0 0.0
        %539 = vmatpush.msra.mxu0 0.0
        %540 = vmatpush.msra.mxu0 0.0
        %541 = vmatpush.msra.mxu0 0.0
        %542 = vmatpush.msra.mxu0 0.0
        %543 = vmatpush.msra.mxu0 0.0
        %544 = vmatpush.msra.mxu0 0.0
        %545 = vmatpush.msra.mxu0 0.0
        %546 = vmatpush.msra.mxu0 0.0
        %547 = vmatpush.msra.mxu0 %v427
        %548 = vmatmul.f32.gmra.mxu0 %v530
        %v549 = vpop.f32.mrf.mxu0
        %v550 = vadd.f32 0.0, %v549
        %551 = vdwg.mxu0
        %v552 = vsel %vm507, %v357, 0
        %554 = vmatpush.msra.mxu0 0.0
        %555 = vmatpush.msra.mxu0 0.0
        %556 = vmatpush.msra.mxu0 0.0
        %557 = vmatpush.msra.mxu0 0.0
        %558 = vmatpush.msra.mxu0 0.0
        %559 = vmatpush.msra.mxu0 0.0
        %560 = vmatpush.msra.mxu0 0.0
        %561 = vmatpush.msra.mxu0 0.0
        %562 = vmatpush.msra.mxu0 0.0
        %563 = vmatpush.msra.mxu0 0.0
        %564 = vmatpush.msra.mxu0 0.0
        %565 = vmatpush.msra.mxu0 0.0
        %566 = vmatpush.msra.mxu0 0.0
        %567 = vmatpush.msra.mxu0 0.0
        %568 = vmatpush.msra.mxu0 0.0
        %569 = vmatpush.msra.mxu0 %v459
        %570 = vmatmul.f32.gmra.mxu0 %v552
        %v571 = vpop.f32.mrf.mxu0
        %v572 = vadd.f32 0.0, %v571
        %573 = vdwg.mxu0
        %v574 = vsel %vm507, %v359, 0
        %576 = vmatpush.msra.mxu0 0.0
        %577 = vmatpush.msra.mxu0 0.0
        %578 = vmatpush.msra.mxu0 0.0
        %579 = vmatpush.msra.mxu0 0.0
        %580 = vmatpush.msra.mxu0 0.0
        %581 = vmatpush.msra.mxu0 0.0
        %582 = vmatpush.msra.mxu0 0.0
        %583 = vmatpush.msra.mxu0 0.0
        %584 = vmatpush.msra.mxu0 0.0
        %585 = vmatpush.msra.mxu0 0.0
        %586 = vmatpush.msra.mxu0 0.0
        %587 = vmatpush.msra.mxu0 0.0
        %588 = vmatpush.msra.mxu0 0.0
        %589 = vmatpush.msra.mxu0 0.0
        %590 = vmatpush.msra.mxu0 0.0
        %591 = vmatpush.msra.mxu0 %v491
        %592 = vmatmul.f32.gmra.mxu0 %v574
        %v593 = vpop.f32.mrf.mxu0
        %v594 = vadd.f32 0.0, %v593
        %595 = vdwg.mxu0
        %v596 = vsel %vm507, %v528, -inf
        %597 = vmax.xlane.f32.xlu0 %v596
        %v598 = vpop.xlane.xlu0 %597
        %v599 = vsel %vm507, %v550, -inf
        %600 = vmax.xlane.f32.xlu0 %v599
        %v601 = vpop.xlane.xlu0 %600
        %v602 = vsel %vm507, %v572, -inf
        %603 = vmax.xlane.f32.xlu0 %v602
        %v604 = vpop.xlane.xlu0 %603
        %v605 = vsel %vm507, %v594, -inf
        %606 = vmax.xlane.f32.xlu0 %v605
        %v607 = vpop.xlane.xlu0 %606
        %v608 = vsub.f32 %v528, %v598
        %v609 = vsub.f32 %v550, %v601
        %v610 = vsub.f32 %v572, %v604
        %v611 = vsub.f32 %v594, %v607
        %v612 = vmul.f32 %v608, 1.442695
        %v613 = vpow.pop %v612
        %v614 = vmul.f32 %v609, 1.442695
        %v615 = vpow.pop %v614
        %v616 = vmul.f32 %v610, 1.442695
        %v617 = vpow.pop %v616
        %v618 = vmul.f32 %v611, 1.442695
        %v619 = vpow.pop %v618
        %v620 = vsel %vm507, %v613, 0.0
        %621 = vadd.xlane.f32.xlu0 %v620
        %v622 = vpop.xlane.xlu0 %621
        %v623 = vsel %vm507, %v615, 0.0
        %624 = vadd.xlane.f32.xlu0 %v623
        %v625 = vpop.xlane.xlu0 %624
        %v626 = vsel %vm507, %v617, 0.0
        %627 = vadd.xlane.f32.xlu0 %v626
        %v628 = vpop.xlane.xlu0 %627
        %v629 = vsel %vm507, %v619, 0.0
        %630 = vadd.xlane.f32.xlu0 %v629
        %v631 = vpop.xlane.xlu0 %630
        %v632 = vrcp.pop %v622
        %v633 = vrcp.pop %v625
        %v634 = vrcp.pop %v628
        %v635 = vrcp.pop %v631
        %v636 = vmul.f32 %v613, %v632
        %v637 = vmul.f32 %v615, %v633
        %v638 = vmul.f32 %v617, %v634
        %v639 = vmul.f32 %v619, %v635
        %640 = vrot.lane.b32.xlu0 %v350, 64
        %v641 = vpop.permute.xlu0 %640
        %642 = vrot.lane.b32.xlu0 %v362, 64
        %v643 = vpop.permute.xlu0 %642
        %644 = vrot.lane.b32.xlu0 %v364, 64
        %v645 = vpop.permute.xlu0 %644
        %646 = vrot.lane.b32.xlu0 %v366, 64
        %v647 = vpop.permute.xlu0 %646
        %652 = vxpose.xlu0.b32.start [1/16] %v641, 128
        %653 = vxpose.xlu0.b32.cont [2/16] 0.0, 128
        %654 = vxpose.xlu0.b32.cont [3/16] 0.0, 128
        %655 = vxpose.xlu0.b32.cont [4/16] 0.0, 128
        %656 = vxpose.xlu0.b32.cont [5/16] 0.0, 128
        %657 = vxpose.xlu0.b32.cont [6/16] 0.0, 128
        %658 = vxpose.xlu0.b32.cont [7/16] 0.0, 128
        %659 = vxpose.xlu0.b32.cont [8/16] 0.0, 128
        %660 = vxpose.xlu0.b32.cont [9/16] 0.0, 128
        %661 = vxpose.xlu0.b32.cont [10/16] 0.0, 128
        %662 = vxpose.xlu0.b32.cont [11/16] 0.0, 128
        %663 = vxpose.xlu0.b32.cont [12/16] 0.0, 128
        %664 = vxpose.xlu0.b32.cont [13/16] 0.0, 128
        %665 = vxpose.xlu0.b32.cont [14/16] 0.0, 128
        %666 = vxpose.xlu0.b32.cont [15/16] 0.0, 128
        %667 = vxpose.xlu0.b32.end [16/16] 0.0, 128
        %v668 = vpop.trf.xlu0
        %v669 = vpop.trf.xlu0
        %v670 = vpop.trf.xlu0
        %v671 = vpop.trf.xlu0
        %v672 = vpop.trf.xlu0
        %v673 = vpop.trf.xlu0
        %v674 = vpop.trf.xlu0
        %v675 = vpop.trf.xlu0
        %v676 = vpop.trf.xlu0
        %v677 = vpop.trf.xlu0
        %v678 = vpop.trf.xlu0
        %v679 = vpop.trf.xlu0
        %v680 = vpop.trf.xlu0
        %v681 = vpop.trf.xlu0
        %v682 = vpop.trf.xlu0
        %v683 = vpop.trf.xlu0
        %684 = vxpose.xlu0.b32.start [1/16] %v643, 128
        %685 = vxpose.xlu0.b32.cont [2/16] 0.0, 128
        %686 = vxpose.xlu0.b32.cont [3/16] 0.0, 128
        %687 = vxpose.xlu0.b32.cont [4/16] 0.0, 128
        %688 = vxpose.xlu0.b32.cont [5/16] 0.0, 128
        %689 = vxpose.xlu0.b32.cont [6/16] 0.0, 128
        %690 = vxpose.xlu0.b32.cont [7/16] 0.0, 128
        %691 = vxpose.xlu0.b32.cont [8/16] 0.0, 128
        %692 = vxpose.xlu0.b32.cont [9/16] 0.0, 128
        %693 = vxpose.xlu0.b32.cont [10/16] 0.0, 128
        %694 = vxpose.xlu0.b32.cont [11/16] 0.0, 128
        %695 = vxpose.xlu0.b32.cont [12/16] 0.0, 128
        %696 = vxpose.xlu0.b32.cont [13/16] 0.0, 128
        %697 = vxpose.xlu0.b32.cont [14/16] 0.0, 128
        %698 = vxpose.xlu0.b32.cont [15/16] 0.0, 128
        %699 = vxpose.xlu0.b32.end [16/16] 0.0, 128
        %v700 = vpop.trf.xlu0
        %v701 = vpop.trf.xlu0
        %v702 = vpop.trf.xlu0
        %v703 = vpop.trf.xlu0
        %v704 = vpop.trf.xlu0
        %v705 = vpop.trf.xlu0
        %v706 = vpop.trf.xlu0
        %v707 = vpop.trf.xlu0
        %v708 = vpop.trf.xlu0
        %v709 = vpop.trf.xlu0
        %v710 = vpop.trf.xlu0
        %v711 = vpop.trf.xlu0
        %v712 = vpop.trf.xlu0
        %v713 = vpop.trf.xlu0
        %v714 = vpop.trf.xlu0
        %v715 = vpop.trf.xlu0
        %716 = vxpose.xlu0.b32.start [1/16] %v645, 128
        %717 = vxpose.xlu0.b32.cont [2/16] 0.0, 128
        %718 = vxpose.xlu0.b32.cont [3/16] 0.0, 128
        %719 = vxpose.xlu0.b32.cont [4/16] 0.0, 128
        %720 = vxpose.xlu0.b32.cont [5/16] 0.0, 128
        %721 = vxpose.xlu0.b32.cont [6/16] 0.0, 128
        %722 = vxpose.xlu0.b32.cont [7/16] 0.0, 128
        %723 = vxpose.xlu0.b32.cont [8/16] 0.0, 128
        %724 = vxpose.xlu0.b32.cont [9/16] 0.0, 128
        %725 = vxpose.xlu0.b32.cont [10/16] 0.0, 128
        %726 = vxpose.xlu0.b32.cont [11/16] 0.0, 128
        %727 = vxpose.xlu0.b32.cont [12/16] 0.0, 128
        %728 = vxpose.xlu0.b32.cont [13/16] 0.0, 128
        %729 = vxpose.xlu0.b32.cont [14/16] 0.0, 128
        %730 = vxpose.xlu0.b32.cont [15/16] 0.0, 128
        %731 = vxpose.xlu0.b32.end [16/16] 0.0, 128
        %v732 = vpop.trf.xlu0
        %v733 = vpop.trf.xlu0
        %v734 = vpop.trf.xlu0
        %v735 = vpop.trf.xlu0
        %v736 = vpop.trf.xlu0
        %v737 = vpop.trf.xlu0
        %v738 = vpop.trf.xlu0
        %v739 = vpop.trf.xlu0
        %v740 = vpop.trf.xlu0
        %v741 = vpop.trf.xlu0
        %v742 = vpop.trf.xlu0
        %v743 = vpop.trf.xlu0
        %v744 = vpop.trf.xlu0
        %v745 = vpop.trf.xlu0
        %v746 = vpop.trf.xlu0
        %v747 = vpop.trf.xlu0
        %748 = vxpose.xlu0.b32.start [1/16] %v647, 128
        %749 = vxpose.xlu0.b32.cont [2/16] 0.0, 128
        %750 = vxpose.xlu0.b32.cont [3/16] 0.0, 128
        %751 = vxpose.xlu0.b32.cont [4/16] 0.0, 128
        %752 = vxpose.xlu0.b32.cont [5/16] 0.0, 128
        %753 = vxpose.xlu0.b32.cont [6/16] 0.0, 128
        %754 = vxpose.xlu0.b32.cont [7/16] 0.0, 128
        %755 = vxpose.xlu0.b32.cont [8/16] 0.0, 128
        %756 = vxpose.xlu0.b32.cont [9/16] 0.0, 128
        %757 = vxpose.xlu0.b32.cont [10/16] 0.0, 128
        %758 = vxpose.xlu0.b32.cont [11/16] 0.0, 128
        %759 = vxpose.xlu0.b32.cont [12/16] 0.0, 128
        %760 = vxpose.xlu0.b32.cont [13/16] 0.0, 128
        %761 = vxpose.xlu0.b32.cont [14/16] 0.0, 128
        %762 = vxpose.xlu0.b32.cont [15/16] 0.0, 128
        %763 = vxpose.xlu0.b32.end [16/16] 0.0, 128
        %v764 = vpop.trf.xlu0
        %v765 = vpop.trf.xlu0
        %v766 = vpop.trf.xlu0
        %v767 = vpop.trf.xlu0
        %v768 = vpop.trf.xlu0
        %v769 = vpop.trf.xlu0
        %v770 = vpop.trf.xlu0
        %v771 = vpop.trf.xlu0
        %v772 = vpop.trf.xlu0
        %v773 = vpop.trf.xlu0
        %v774 = vpop.trf.xlu0
        %v775 = vpop.trf.xlu0
        %v776 = vpop.trf.xlu0
        %v777 = vpop.trf.xlu0
        %v778 = vpop.trf.xlu0
        %v779 = vpop.trf.xlu0
        %v781 = vsel %vm507, %v668, 0
        %v784 = vsel %vm507, %v636, 0
        %786 = vmatpush.xpose.msra.mxu0 0.0
        %787 = vmatpush.xpose.msra.mxu0 0.0
        %788 = vmatpush.xpose.msra.mxu0 0.0
        %789 = vmatpush.xpose.msra.mxu0 0.0
        %790 = vmatpush.xpose.msra.mxu0 0.0
        %791 = vmatpush.xpose.msra.mxu0 0.0
        %792 = vmatpush.xpose.msra.mxu0 0.0
        %793 = vmatpush.xpose.msra.mxu0 0.0
        %794 = vmatpush.xpose.msra.mxu0 0.0
        %795 = vmatpush.xpose.msra.mxu0 0.0
        %796 = vmatpush.xpose.msra.mxu0 0.0
        %797 = vmatpush.xpose.msra.mxu0 0.0
        %798 = vmatpush.xpose.msra.mxu0 0.0
        %799 = vmatpush.xpose.msra.mxu0 0.0
        %800 = vmatpush.xpose.msra.mxu0 0.0
        %801 = vmatpush.xpose.msra.mxu0 %v784
        %802 = vmatmul.f32.gmra.mxu0 %v781
        %v803 = vpop.f32.mrf.mxu0
        %v804 = vadd.f32 0.0, %v803
        %805 = vdwg.mxu0
        %v807 = vsel %vm507, %v700, 0
        %v810 = vsel %vm507, %v637, 0
        %812 = vmatpush.xpose.msra.mxu0 0.0
        %813 = vmatpush.xpose.msra.mxu0 0.0
        %814 = vmatpush.xpose.msra.mxu0 0.0
        %815 = vmatpush.xpose.msra.mxu0 0.0
        %816 = vmatpush.xpose.msra.mxu0 0.0
        %817 = vmatpush.xpose.msra.mxu0 0.0
        %818 = vmatpush.xpose.msra.mxu0 0.0
        %819 = vmatpush.xpose.msra.mxu0 0.0
        %820 = vmatpush.xpose.msra.mxu0 0.0
        %821 = vmatpush.xpose.msra.mxu0 0.0
        %822 = vmatpush.xpose.msra.mxu0 0.0
        %823 = vmatpush.xpose.msra.mxu0 0.0
        %824 = vmatpush.xpose.msra.mxu0 0.0
        %825 = vmatpush.xpose.msra.mxu0 0.0
        %826 = vmatpush.xpose.msra.mxu0 0.0
        %827 = vmatpush.xpose.msra.mxu0 %v810
        %828 = vmatmul.f32.gmra.mxu0 %v807
        %v829 = vpop.f32.mrf.mxu0
        %v830 = vadd.f32 0.0, %v829
        %831 = vdwg.mxu0
        %v833 = vsel %vm507, %v732, 0
        %v836 = vsel %vm507, %v638, 0
        %838 = vmatpush.xpose.msra.mxu0 0.0
        %839 = vmatpush.xpose.msra.mxu0 0.0
        %840 = vmatpush.xpose.msra.mxu0 0.0
        %841 = vmatpush.xpose.msra.mxu0 0.0
        %842 = vmatpush.xpose.msra.mxu0 0.0
        %843 = vmatpush.xpose.msra.mxu0 0.0
        %844 = vmatpush.xpose.msra.mxu0 0.0
        %845 = vmatpush.xpose.msra.mxu0 0.0
        %846 = vmatpush.xpose.msra.mxu0 0.0
        %847 = vmatpush.xpose.msra.mxu0 0.0
        %848 = vmatpush.xpose.msra.mxu0 0.0
        %849 = vmatpush.xpose.msra.mxu0 0.0
        %850 = vmatpush.xpose.msra.mxu0 0.0
        %851 = vmatpush.xpose.msra.mxu0 0.0
        %852 = vmatpush.xpose.msra.mxu0 0.0
        %853 = vmatpush.xpose.msra.mxu0 %v836
        %854 = vmatmul.f32.gmra.mxu0 %v833
        %v855 = vpop.f32.mrf.mxu0
        %v856 = vadd.f32 0.0, %v855
        %857 = vdwg.mxu0
        %v859 = vsel %vm507, %v764, 0
        %v862 = vsel %vm507, %v639, 0
        %864 = vmatpush.xpose.msra.mxu0 0.0
        %865 = vmatpush.xpose.msra.mxu0 0.0
        %866 = vmatpush.xpose.msra.mxu0 0.0
        %867 = vmatpush.xpose.msra.mxu0 0.0
        %868 = vmatpush.xpose.msra.mxu0 0.0
        %869 = vmatpush.xpose.msra.mxu0 0.0
        %870 = vmatpush.xpose.msra.mxu0 0.0
        %871 = vmatpush.xpose.msra.mxu0 0.0
        %872 = vmatpush.xpose.msra.mxu0 0.0
        %873 = vmatpush.xpose.msra.mxu0 0.0
        %874 = vmatpush.xpose.msra.mxu0 0.0
        %875 = vmatpush.xpose.msra.mxu0 0.0
        %876 = vmatpush.xpose.msra.mxu0 0.0
        %877 = vmatpush.xpose.msra.mxu0 0.0
        %878 = vmatpush.xpose.msra.mxu0 0.0
        %879 = vmatpush.xpose.msra.mxu0 %v862
        %880 = vmatmul.f32.gmra.mxu0 %v859
        %v881 = vpop.f32.mrf.mxu0
        %v882 = vadd.f32 0.0, %v881
        %883 = vdwg.mxu0
        %884 = vxpose.xlu0.b32.start [1/16] %v804, 128
        %885 = vxpose.xlu0.b32.cont [2/16] 0.0, 128
        %886 = vxpose.xlu0.b32.cont [3/16] 0.0, 128
        %887 = vxpose.xlu0.b32.cont [4/16] 0.0, 128
        %888 = vxpose.xlu0.b32.cont [5/16] 0.0, 128
        %889 = vxpose.xlu0.b32.cont [6/16] 0.0, 128
        %890 = vxpose.xlu0.b32.cont [7/16] 0.0, 128
        %891 = vxpose.xlu0.b32.cont [8/16] 0.0, 128
        %892 = vxpose.xlu0.b32.cont [9/16] 0.0, 128
        %893 = vxpose.xlu0.b32.cont [10/16] 0.0, 128
        %894 = vxpose.xlu0.b32.cont [11/16] 0.0, 128
        %895 = vxpose.xlu0.b32.cont [12/16] 0.0, 128
        %896 = vxpose.xlu0.b32.cont [13/16] 0.0, 128
        %897 = vxpose.xlu0.b32.cont [14/16] 0.0, 128
        %898 = vxpose.xlu0.b32.cont [15/16] 0.0, 128
        %899 = vxpose.xlu0.b32.end [16/16] 0.0, 128
        %v900 = vpop.trf.xlu0
        %v901 = vpop.trf.xlu0
        %v902 = vpop.trf.xlu0
        %v903 = vpop.trf.xlu0
        %v904 = vpop.trf.xlu0
        %v905 = vpop.trf.xlu0
        %v906 = vpop.trf.xlu0
        %v907 = vpop.trf.xlu0
        %v908 = vpop.trf.xlu0
        %v909 = vpop.trf.xlu0
        %v910 = vpop.trf.xlu0
        %v911 = vpop.trf.xlu0
        %v912 = vpop.trf.xlu0
        %v913 = vpop.trf.xlu0
        %v914 = vpop.trf.xlu0
        %v915 = vpop.trf.xlu0
        %916 = vxpose.xlu0.b32.start [1/16] %v830, 128
        %917 = vxpose.xlu0.b32.cont [2/16] 0.0, 128
        %918 = vxpose.xlu0.b32.cont [3/16] 0.0, 128
        %919 = vxpose.xlu0.b32.cont [4/16] 0.0, 128
        %920 = vxpose.xlu0.b32.cont [5/16] 0.0, 128
        %921 = vxpose.xlu0.b32.cont [6/16] 0.0, 128
        %922 = vxpose.xlu0.b32.cont [7/16] 0.0, 128
        %923 = vxpose.xlu0.b32.cont [8/16] 0.0, 128
        %924 = vxpose.xlu0.b32.cont [9/16] 0.0, 128
        %925 = vxpose.xlu0.b32.cont [10/16] 0.0, 128
        %926 = vxpose.xlu0.b32.cont [11/16] 0.0, 128
        %927 = vxpose.xlu0.b32.cont [12/16] 0.0, 128
        %928 = vxpose.xlu0.b32.cont [13/16] 0.0, 128
        %929 = vxpose.xlu0.b32.cont [14/16] 0.0, 128
        %930 = vxpose.xlu0.b32.cont [15/16] 0.0, 128
        %931 = vxpose.xlu0.b32.end [16/16] 0.0, 128
        %v932 = vpop.trf.xlu0
        %v933 = vpop.trf.xlu0
        %v934 = vpop.trf.xlu0
        %v935 = vpop.trf.xlu0
        %v936 = vpop.trf.xlu0
        %v937 = vpop.trf.xlu0
        %v938 = vpop.trf.xlu0
        %v939 = vpop.trf.xlu0
        %v940 = vpop.trf.xlu0
        %v941 = vpop.trf.xlu0
        %v942 = vpop.trf.xlu0
        %v943 = vpop.trf.xlu0
        %v944 = vpop.trf.xlu0
        %v945 = vpop.trf.xlu0
        %v946 = vpop.trf.xlu0
        %v947 = vpop.trf.xlu0
        %948 = vxpose.xlu0.b32.start [1/16] %v856, 128
        %949 = vxpose.xlu0.b32.cont [2/16] 0.0, 128
        %950 = vxpose.xlu0.b32.cont [3/16] 0.0, 128
        %951 = vxpose.xlu0.b32.cont [4/16] 0.0, 128
        %952 = vxpose.xlu0.b32.cont [5/16] 0.0, 128
        %953 = vxpose.xlu0.b32.cont [6/16] 0.0, 128
        %954 = vxpose.xlu0.b32.cont [7/16] 0.0, 128
        %955 = vxpose.xlu0.b32.cont [8/16] 0.0, 128
        %956 = vxpose.xlu0.b32.cont [9/16] 0.0, 128
        %957 = vxpose.xlu0.b32.cont [10/16] 0.0, 128
        %958 = vxpose.xlu0.b32.cont [11/16] 0.0, 128
        %959 = vxpose.xlu0.b32.cont [12/16] 0.0, 128
        %960 = vxpose.xlu0.b32.cont [13/16] 0.0, 128
        %961 = vxpose.xlu0.b32.cont [14/16] 0.0, 128
        %962 = vxpose.xlu0.b32.cont [15/16] 0.0, 128
        %963 = vxpose.xlu0.b32.end [16/16] 0.0, 128
        %v964 = vpop.trf.xlu0
        %v965 = vpop.trf.xlu0
        %v966 = vpop.trf.xlu0
        %v967 = vpop.trf.xlu0
        %v968 = vpop.trf.xlu0
        %v969 = vpop.trf.xlu0
        %v970 = vpop.trf.xlu0
        %v971 = vpop.trf.xlu0
        %v972 = vpop.trf.xlu0
        %v973 = vpop.trf.xlu0
        %v974 = vpop.trf.xlu0
        %v975 = vpop.trf.xlu0
        %v976 = vpop.trf.xlu0
        %v977 = vpop.trf.xlu0
        %v978 = vpop.trf.xlu0
        %v979 = vpop.trf.xlu0
        %980 = vxpose.xlu0.b32.start [1/16] %v882, 128
        %981 = vxpose.xlu0.b32.cont [2/16] 0.0, 128
        %982 = vxpose.xlu0.b32.cont [3/16] 0.0, 128
        %983 = vxpose.xlu0.b32.cont [4/16] 0.0, 128
        %984 = vxpose.xlu0.b32.cont [5/16] 0.0, 128
        %985 = vxpose.xlu0.b32.cont [6/16] 0.0, 128
        %986 = vxpose.xlu0.b32.cont [7/16] 0.0, 128
        %987 = vxpose.xlu0.b32.cont [8/16] 0.0, 128
        %988 = vxpose.xlu0.b32.cont [9/16] 0.0, 128
        %989 = vxpose.xlu0.b32.cont [10/16] 0.0, 128
        %990 = vxpose.xlu0.b32.cont [11/16] 0.0, 128
        %991 = vxpose.xlu0.b32.cont [12/16] 0.0, 128
        %992 = vxpose.xlu0.b32.cont [13/16] 0.0, 128
        %993 = vxpose.xlu0.b32.cont [14/16] 0.0, 128
        %994 = vxpose.xlu0.b32.cont [15/16] 0.0, 128
        %995 = vxpose.xlu0.b32.end [16/16] 0.0, 128
        %v996 = vpop.trf.xlu0
        %v997 = vpop.trf.xlu0
        %v998 = vpop.trf.xlu0
        %v999 = vpop.trf.xlu0
        %v1000 = vpop.trf.xlu0
        %v1001 = vpop.trf.xlu0
        %v1002 = vpop.trf.xlu0
        %v1003 = vpop.trf.xlu0
        %v1004 = vpop.trf.xlu0
        %v1005 = vpop.trf.xlu0
        %v1006 = vpop.trf.xlu0
        %v1007 = vpop.trf.xlu0
        %v1008 = vpop.trf.xlu0
        %v1009 = vpop.trf.xlu0
        %v1010 = vpop.trf.xlu0
        %v1011 = vpop.trf.xlu0
        %v1012 = vrot.slane %v964, 4
        %vm1013 = vcmask 1047556
        %v1014 = vsel %vm1013, %v1012, %v900
        %v1015 = vrot.slane %v900, 4
        %v1016 = vsel %vm1013, %v964, %v1015
        %v1018 = vunpack.c.l.s4 1983009808
        %v1019 = vunpack.c.0.s8 %v1018
        %v1020 = vperm.slane %v1014, %v1019
        %v1022 = vunpack.c.l.s4 1983009808
        %v1023 = vunpack.c.0.s8 %v1022
        %v1024 = vperm.slane %v1016, %v1023
        %v1025 = vrot.slane %v996, 4
        %v1026 = vsel %vm1013, %v1025, %v932
        %v1027 = vrot.slane %v932, 4
        %v1028 = vsel %vm1013, %v996, %v1027
        %v1030 = vunpack.c.l.s4 1983009808
        %v1031 = vunpack.c.0.s8 %v1030
        %v1032 = vperm.slane %v1026, %v1031
        %v1034 = vunpack.c.l.s4 1983009808
        %v1035 = vunpack.c.0.s8 %v1034
        %v1036 = vperm.slane %v1028, %v1035
        %v1037 = vrot.slane %v1032, 4
        %v1038 = vsel %vm1013, %v1037, %v1020
        %v1039 = vrot.slane %v1020, 4
        %v1040 = vsel %vm1013, %v1032, %v1039
        %v1042 = vunpack.c.l.s4 1934713408
        %v1043 = vunpack.c.0.s8 %v1042
        %v1044 = vperm.slane %v1038, %v1043
        %v1046 = vunpack.c.l.s4 1934713408
        %v1047 = vunpack.c.0.s8 %v1046
        %v1048 = vperm.slane %v1040, %v1047
        %v1049 = vrot.slane %v1036, 4
        %v1050 = vsel %vm1013, %v1049, %v1024
        %v1051 = vrot.slane %v1024, 4
        %v1052 = vsel %vm1013, %v1036, %v1051
        %v1054 = vunpack.c.l.s4 1934713408
        %v1055 = vunpack.c.0.s8 %v1054
        %v1056 = vperm.slane %v1050, %v1055
        %v1058 = vunpack.c.l.s4 1934713408
        %v1059 = vunpack.c.0.s8 %v1058
        %v1060 = vperm.slane %v1052, %v1059
        %v1061 = vrot.slane %v1044, 4
        %v1062 = vsel %vm1013, 0.0, %v1061
        %v1063 = vrot.slane %v1048, 4
        %v1064 = vsel %vm1013, 0.0, %v1063
        %v1065 = vrot.slane %v1056, 4
        %v1066 = vsel %vm1013, 0.0, %v1065
        %v1067 = vrot.slane %v1060, 4
        %v1068 = vsel %vm1013, 0.0, %v1067
        %v1069 = vsel %vm1013, %v1063, %v1044
        %v1071 = vunpack.c.l.s4 1983009808
        %v1072 = vunpack.c.0.s8 %v1071
        %v1073 = vperm.slane %v1069, %v1072
        %v1074 = vrot.slane %v1064, 4
        %v1075 = vsel %vm1013, %v1074, %v1062
        %v1077 = vunpack.c.l.s4 1983009808
        %v1078 = vunpack.c.0.s8 %v1077
        %v1079 = vperm.slane %v1075, %v1078
        %v1080 = vsel %vm1013, %v1067, %v1056
        %v1082 = vunpack.c.l.s4 1983009808
        %v1083 = vunpack.c.0.s8 %v1082
        %v1084 = vperm.slane %v1080, %v1083
        %v1085 = vrot.slane %v1068, 4
        %v1086 = vsel %vm1013, %v1085, %v1066
        %v1088 = vunpack.c.l.s4 1983009808
        %v1089 = vunpack.c.0.s8 %v1088
        %v1090 = vperm.slane %v1086, %v1089
        %v1091 = vrot.slane %v1079, 4
        %v1092 = vsel %vm1013, %v1091, %v1073
        %v1093 = vrot.slane %v1073, 4
        %v1094 = vsel %vm1013, %v1079, %v1093
        %v1096 = vunpack.c.l.s4 1934713408
        %v1097 = vunpack.c.0.s8 %v1096
        %v1098 = vperm.slane %v1092, %v1097
        %v1100 = vunpack.c.l.s4 1934713408
        %v1101 = vunpack.c.0.s8 %v1100
        %v1102 = vperm.slane %v1094, %v1101
        %v1103 = vrot.slane %v1090, 4
        %v1104 = vsel %vm1013, %v1103, %v1084
        %v1105 = vrot.slane %v1084, 4
        %v1106 = vsel %vm1013, %v1090, %v1105
        %v1108 = vunpack.c.l.s4 1934713408
        %v1109 = vunpack.c.0.s8 %v1108
        %v1110 = vperm.slane %v1104, %v1109
        %v1112 = vunpack.c.l.s4 1934713408
        %v1113 = vunpack.c.0.s8 %v1112
        %v1114 = vperm.slane %v1106, %v1113
        %v1115 = vrot.slane %v1110, 4
        %v1116 = vsel %vm1013, %v1115, %v1098
        %v1117 = vrot.slane %v1098, 4
        %v1118 = vsel %vm1013, %v1110, %v1117
        %v1119 = vrot.slane %v1114, 4
        %v1120 = vsel %vm1013, %v1119, %v1102
        %v1121 = vrot.slane %v1102, 4
        %v1122 = vsel %vm1013, %v1114, %v1121
        %1124 = vrot.lane.b32.xlu0 %v1118, 8
        %v1125 = vpop.permute.xlu0 %1124
        %1128 = vrot.lane.b32.xlu0 %v1120, 16
        %v1129 = vpop.permute.xlu0 %1128
        %1132 = vrot.lane.b32.xlu0 %v1122, 24
        %v1133 = vpop.permute.xlu0 %1132
        %v1135 = vsel %vm507, %v1116, %v1125
        %vm1136 = vcmask 130048
        %v1137 = vsel %vm1136, %v1135, %v1129
        %vm1138 = vcmask 195584
        %v1139 = vsel %vm1138, %v1137, %v1133
        %v1140 = vld [vmem:[#allocation7] sm:$0xff]
        %v1141 = vld [vmem:[#allocation7 + $0x8] sm:$0xff]
        %v1142 = vld [vmem:[#allocation7 + $0x10] sm:$0xff]
        %v1143 = vld [vmem:[#allocation7 + $0x18] sm:$0xff]
        %v1144 = vld [vmem:[%s4] sm:$0x1]
        %v1146 = vperm.slane %v1144, 0
        %v1149 = vsel %vm328, %v1139, 0
        %1151 = vmatpush.msra.mxu0 0.0
        %1152 = vmatpush.msra.mxu0 0.0
        %1153 = vmatpush.msra.mxu0 0.0
        %1154 = vmatpush.msra.mxu0 0.0
        %1155 = vmatpush.msra.mxu0 0.0
        %1156 = vmatpush.msra.mxu0 0.0
        %1157 = vmatpush.msra.mxu0 0.0
        %1158 = vmatpush.msra.mxu0 0.0
        %1159 = vmatpush.msra.mxu0 0.0
        %1160 = vmatpush.msra.mxu0 0.0
        %1161 = vmatpush.msra.mxu0 0.0
        %1162 = vmatpush.msra.mxu0 0.0
        %1163 = vmatpush.msra.mxu0 %v1143
        %1164 = vmatpush.msra.mxu0 %v1142
        %1165 = vmatpush.msra.mxu0 %v1141
        %1166 = vmatpush.msra.mxu0 %v1140
        %1167 = vmatmul.f32.gmra.mxu0 %v1149
        %v1168 = vpop.f32.mrf.mxu0
        %v1169 = vadd.f32 %v1146, %v1168
        %1170 = vdwg.mxu0
        %v1171 = vadd.f32 %v1169, %v319
        %v1172 = vld [vmem:[#allocation8] sm:$0xff]
        %v1173 = vld [vmem:[#allocation8 + $0x8] sm:$0xff]
        %v1174 = vld [vmem:[#allocation8 + $0x10] sm:$0xff]
        %v1175 = vld [vmem:[#allocation8 + $0x18] sm:$0xff]
        %v1177 = vsel %vm328, %v1171, 0
        %1179 = vmatpush.msra.mxu0 0.0
        %1180 = vmatpush.msra.mxu0 0.0
        %1181 = vmatpush.msra.mxu0 0.0
        %1182 = vmatpush.msra.mxu0 0.0
        %1183 = vmatpush.msra.mxu0 0.0
        %1184 = vmatpush.msra.mxu0 0.0
        %1185 = vmatpush.msra.mxu0 0.0
        %1186 = vmatpush.msra.mxu0 0.0
        %1187 = vmatpush.msra.mxu0 0.0
        %1188 = vmatpush.msra.mxu0 0.0
        %1189 = vmatpush.msra.mxu0 0.0
        %1190 = vmatpush.msra.mxu0 0.0
        %1191 = vmatpush.msra.mxu0 %v1175
        %1192 = vmatpush.msra.mxu0 %v1174
        %1193 = vmatpush.msra.mxu0 %v1173
        %1194 = vmatpush.msra.mxu0 %v1172
        %1195 = vmatmul.f32.gmra.mxu0 %v1177
        %v1196 = vpop.f32.mrf.mxu0
        %v1197 = vadd.f32 %v1171, %v1196
        %1198 = vdwg.mxu0
        %1199 = vst.msk [vmem:[%s318] sm:$0xff] %vm328, %v1197
        %s1200 = sand.u32 %s164, 1
        %s1201 = scalar_lea.sflag [#allocation4], %s1200
        %s1202 = sand.u32 %s164, 1
        %s1203 = smul.addr %s1202, 8
        %s1204 = scalar_lea.vmem [#allocation10], %s1203
        // Predicated region
        $region61: #{tpu_custom_call.1} parent=43 // pred_check
          %p1205 = pneg %p174
        $region62: #{tpu_custom_call.1} parent=43 // pred_check_branch
          %1207 = sbr.rel (%p1205) target = $region64
        $region63: #{tpu_custom_call.1} parent=43 // pred_region
          %1209 = vsyncadd %s1201, 0
          %s1210 = smul.addr %s25, 8
          %s1211 = scalar_lea.hbm %s6, %s1210
          %s1213 = sshll.u32 %s1204, 4
          %s1214 = int_to_ptr.vmem [resolvable:$true] %s1213
          %s1215 = sshll.u32 %s1211, 4
          %s1216 = int_to_ptr.hbm [resolvable:$true] %s1215
          %1218 = dma.vmem_to_hbm [thread:$0]  %s1214, 128, %s1216, %s1201
        $region64: #{tpu_custom_call.1} parent=43 // pred_fallthru
          _
      $region44: #{tpu_custom_call.1} parent=5 // pred_fallthru
        _
      %p1219 = scmp.le.s32.totalorder 2, %s20
      // Predicated region
      $region65: #{tpu_custom_call.1} parent=5 // pred_check
        %p1220 = pneg %p1219
      $region66: #{tpu_custom_call.1} parent=5 // pred_check_branch
        %1222 = sbr.rel (%p1220) target = $region68
      $region67: #{tpu_custom_call.1} parent=5 // pred_region
        %s1223 = ssub.s32 %s20, 2
        // Predicated region
        $region69: #{tpu_custom_call.1} parent=67 // pred_check
          %p1224 = pneg %p180
        $region70: #{tpu_custom_call.1} parent=67 // pred_check_branch
          %1226 = sbr.rel (%p1224) target = $region72
        $region71: #{tpu_custom_call.1} parent=67 // pred_region
          %s1227 = sand.u32 %s165, 1
          %s1228 = scalar_lea.sflag [#allocation4], %s1227
          %s1229 = sand.u32 %s165, 1
          %s1230 = smul.addr %s1229, 8
          %s1231 = scalar_lea.vmem [#allocation10], %s1230
          %1233 = dma.done %s1228, 128
        $region72: #{tpu_custom_call.1} parent=67 // pred_fallthru
          _
      $region68: #{tpu_custom_call.1} parent=5 // pred_fallthru
        _
    $region6: #{tpu_custom_call.1} parent=1 // loop_footer
      %s24 = sadd.s32 1, %s20
    $region7: #{tpu_custom_call.1} parent=1 // loop_footer_branch
      %19 = sbr.rel target = $region3
    $region8: #{tpu_custom_call.1} parent=1 // loop_exit
      _
    %1234 = vsyncpa [#allocation3], 1
    %s1235 = scalar_lea.sflag [#allocation3], 1
    %1236 = vsyncpa %s1235, 1
    %1237 = vsyncpa [#allocation6], 1
    %1238 = vsyncpa [#allocation9], 1
    %1239 = vsyncpa [#allocation4], 1
    %s1240 = scalar_lea.sflag [#allocation4], 1
    %1241 = vsyncpa %s1240, 1

</llo_original>
